<compile_context>
chip_gen: v7x
topology: tpu7x:2x2x1
jax: 0.10.0
libtpu: 0.0.40
codegen_flags: <defaults>
</compile_context>

<pallas_src>
import math
import jax
import jax.numpy as jnp
from jax import lax
from jax.experimental import pallas as pl
from jax.experimental.pallas import tpu as pltpu

_INV_SQRT2 = 1.0 / math.sqrt(2.0)


def _pixel_attention_kernel(x_ref, w1_ref, w2_ref, o_ref):
    # x_ref : (C, tile_L)   one batch element, one L tile (batch dim squeezed)
    # w1_ref: (C//r, C)     Conv1d fc[0] weight (kernel-size-1 dim squeezed)
    # w2_ref: (C, C//r)     Conv1d fc[2] weight (kernel-size-1 dim squeezed)
    x = x_ref[...]                                    # native dtype -> MXU input

    # 1x1 Conv1d (no bias) over channels == matmul, f32 accumulation on MXU.
    h = jnp.dot(w1_ref[...], x, preferred_element_type=jnp.float32)   # (Cr, tL)

    # Exact (erf-based) GELU, matching torch.nn.GELU default.
    h = 0.5 * h * (1.0 + lax.erf(h * _INV_SQRT2))

    y = jnp.dot(w2_ref[...], h.astype(w2_ref.dtype),
                preferred_element_type=jnp.float32)                   # (C, tL)

    # Sigmoid gate (exp goes to the EUP slot; no overflow for very negative y),
    # then elementwise multiply with the input.
    gate = jax.nn.sigmoid(y)
    o_ref[...] = (x.astype(jnp.float32) * gate).astype(o_ref.dtype)


def pixel_attention(x, w1, w2, *, tile_l=1024,
                    vmem_budget_bytes=32 * 1024 * 1024):
    """x: (N, C, L).  w1: (C//r, C), w2: (C, C//r) Conv1d weights (k=1 squeezed).
    Returns (N, C, L) with the same dtype as x."""
    N, C, L = x.shape
    Cr = w1.shape[0]
    assert w1.shape == (Cr, C) and w2.shape == (C, Cr)

    itemsize = jnp.dtype(x.dtype).itemsize
    # VMEM estimate per L column: double-buffered x + out tiles plus the f32
    # activation / gate intermediates; weights are double-buffered once.
    per_col = 2 * 2 * C * itemsize + (Cr + 2 * C) * 4
    w_bytes = 2 * 2 * C * Cr * itemsize
    max_tile = max(128, (vmem_budget_bytes - w_bytes) // max(per_col, 1))

    tile = min(tile_l, L, max_tile)
    if tile < L:
        tile = max(128, (tile // 128) * 128)          # lane-aligned when tiling L
    else:
        tile = L                                      # full extent is always legal

    # Grid: (batch, L tiles).  No pad / slice: Pallas masks the partial last
    # block along L automatically.
    grid = (N, pl.cdiv(L, tile))

    return pl.pallas_call(
        _pixel_attention_kernel,
        out_shape=jax.ShapeDtypeStruct((N, C, L), x.dtype),
        grid_spec=pltpu.PrefetchScalarGridSpec(
            num_scalar_prefetch=0,
            grid=grid,
            in_specs=[
                pl.BlockSpec((pl.Squeezed(), C, tile), lambda n, l: (n, 0, l)),
                # Weights are grid-invariant (index_map always (0, 0)) so Pallas
                # skips re-DMA after the first fetch.
                pl.BlockSpec((Cr, C), lambda n, l: (0, 0)),
                pl.BlockSpec((C, Cr), lambda n, l: (0, 0)),
            ],
            out_specs=pl.BlockSpec((pl.Squeezed(), C, tile), lambda n, l: (n, 0, l)),
        ),
        compiler_params=pltpu.CompilerParams(
            dimension_semantics=("parallel", "parallel"),
            vmem_limit_bytes=48 * 1024 * 1024),
    )(x, w1, w2)


def _reference(x, w1, w2):
    # pure-JAX reference of the PyTorch forward
    h = jnp.einsum("ncl,oc->nol", x, w1)               # Conv1d k=1, no bias
    h = 0.5 * h * (1.0 + lax.erf(h * _INV_SQRT2))      # exact GELU
    y = jnp.einsum("ncl,oc->nol", h, w2)
    gate = jax.nn.sigmoid(y)
    return x * gate


if __name__ == "__main__":
    key = jax.random.PRNGKey(0)
    N, C, L = 2, 4, 16
    ratio = 2
    Cr = C // ratio

    kx, k1, k2 = jax.random.split(key, 3)
    x = jax.random.normal(kx, (N, C, L), dtype=jnp.float32)
    # deterministic parameter init (Conv1d weight shapes, kernel dim squeezed)
    w1 = jax.random.normal(k1, (Cr, C), dtype=jnp.float32) * (1.0 / math.sqrt(C))
    w2 = jax.random.normal(k2, (C, Cr), dtype=jnp.float32) * (1.0 / math.sqrt(Cr))

    out = jax.block_until_ready(pixel_attention(x, w1, w2))

    ref = _reference(x, w1, w2)
    if not jnp.allclose(out, ref, atol=1e-5, rtol=1e-5):
        raise AssertionError("Pallas kernel mismatch vs reference")

    print("KERNEL_OK")
</pallas_src>

<mosaic_0001>
module attributes {stable_mosaic.version = 11 : i64} {
  func.func @_pixel_attention_kernel(%arg0: i32, %arg1: i32, %arg2: memref<1x4x16xf32, #tpu.memory_space<vmem>>, %arg3: memref<2x4xf32, #tpu.memory_space<vmem>>, %arg4: memref<4x2xf32, #tpu.memory_space<vmem>>, %arg5: memref<1x4x16xf32, #tpu.memory_space<vmem>>) attributes {dimension_semantics = [#tpu.dimension_semantics<parallel>, #tpu.dimension_semantics<parallel>], iteration_bounds = array<i64: 2, 1>, scalar_prefetch = 0 : i64, scratch_operands = 0 : i64, tpu.core_type = #tpu.core_type<tc>, window_params = [{transform_indices = @transform_0, window_bounds = array<i64: 1, 4, 16>}, {pipeline_mode = #tpu.pipeline_mode<synchronous>, transform_indices = @transform_1, window_bounds = array<i64: 2, 4>}, {pipeline_mode = #tpu.pipeline_mode<synchronous>, transform_indices = @transform_2, window_bounds = array<i64: 4, 2>}, {transform_indices = @transform_3, window_bounds = array<i64: 1, 4, 16>}]} {
    %c0 = arith.constant 0 : index
    %c0_0 = arith.constant 0 : index
    %c0_1 = arith.constant 0 : index
    %0 = vector.load %arg2[%c0, %c0_0, %c0_1] : memref<1x4x16xf32, #tpu.memory_space<vmem>>, vector<1x4x16xf32>
    %1 = vector.shape_cast %0 : vector<1x4x16xf32> to vector<4x16xf32>
    %c0_2 = arith.constant 0 : index
    %c0_3 = arith.constant 0 : index
    %2 = vector.load %arg3[%c0_2, %c0_3] : memref<2x4xf32, #tpu.memory_space<vmem>>, vector<2x4xf32>
    %cst = arith.constant dense<0.000000e+00> : vector<2x16xf32>
    %3 = tpu.matmul %2, %1, %cst {dimension_numbers = #tpu.dot_dimension_numbers<[1], [0], [0], [1], [0, 0, 1, 1], [], []>} : vector<2x4xf32>, vector<4x16xf32>, vector<2x16xf32> -> vector<2x16xf32>
    %cst_4 = arith.constant 5.000000e-01 : f32
    %4 = vector.broadcast %cst_4 : f32 to vector<2x16xf32>
    %5 = arith.mulf %4, %3 : vector<2x16xf32>
    %cst_5 = arith.constant 0.707106769 : f32
    %6 = vector.broadcast %cst_5 : f32 to vector<2x16xf32>
    %7 = arith.mulf %3, %6 : vector<2x16xf32>
    %8 = math.erf %7 : vector<2x16xf32>
    %cst_6 = arith.constant 1.000000e+00 : f32
    %9 = vector.broadcast %cst_6 : f32 to vector<2x16xf32>
    %10 = arith.addf %9, %8 : vector<2x16xf32>
    %11 = arith.mulf %5, %10 : vector<2x16xf32>
    %c0_7 = arith.constant 0 : index
    %c0_8 = arith.constant 0 : index
    %12 = vector.load %arg4[%c0_7, %c0_8] : memref<4x2xf32, #tpu.memory_space<vmem>>, vector<4x2xf32>
    %cst_9 = arith.constant dense<0.000000e+00> : vector<4x16xf32>
    %13 = tpu.matmul %12, %11, %cst_9 {dimension_numbers = #tpu.dot_dimension_numbers<[1], [0], [0], [1], [0, 0, 1, 1], [], []>} : vector<4x2xf32>, vector<2x16xf32>, vector<4x16xf32> -> vector<4x16xf32>
    %14 = arith.negf %13 : vector<4x16xf32>
    %15 = math.exp %14 : vector<4x16xf32>
    %cst_10 = arith.constant 1.000000e+00 : f32
    %16 = vector.broadcast %cst_10 : f32 to vector<4x16xf32>
    %17 = arith.addf %16, %15 : vector<4x16xf32>
    %18 = arith.divf %16, %17 : vector<4x16xf32>
    %19 = arith.mulf %1, %18 : vector<4x16xf32>
    %c0_11 = arith.constant 0 : index
    %c0_12 = arith.constant 0 : index
    %c0_13 = arith.constant 0 : index
    %20 = vector.load %arg5[%c0_11, %c0_12, %c0_13] : memref<1x4x16xf32, #tpu.memory_space<vmem>>, vector<1x4x16xf32>
    %21 = vector.shape_cast %20 : vector<1x4x16xf32> to vector<4x16xf32>
    %22 = vector.shape_cast %19 : vector<4x16xf32> to vector<1x4x16xf32>
    tpu.vector_store %arg5[%c0_11, %c0_12, %c0_13], %22 {strides = array<i32>} : memref<1x4x16xf32, #tpu.memory_space<vmem>>, vector<1x4x16xf32>,
    return
  }
  func.func @transform_0(%arg0: i32, %arg1: i32) -> (i32, i32, i32) {
    %c0_i32 = arith.constant 0 : i32
    %c0_i32_0 = arith.constant 0 : i32
    return %arg0, %c0_i32, %arg1 : i32, i32, i32
  }
  func.func @transform_1(%arg0: i32, %arg1: i32) -> (i32, i32) {
    %c0_i32 = arith.constant 0 : i32
    %c0_i32_0 = arith.constant 0 : i32
    %c0_i32_1 = arith.constant 0 : i32
    return %c0_i32, %c0_i32_0 : i32, i32
  }
  func.func @transform_2(%arg0: i32, %arg1: i32) -> (i32, i32) {
    %c0_i32 = arith.constant 0 : i32
    %c0_i32_0 = arith.constant 0 : i32
    %c0_i32_1 = arith.constant 0 : i32
    return %c0_i32, %c0_i32_0 : i32, i32
  }
  func.func @transform_3(%arg0: i32, %arg1: i32) -> (i32, i32, i32) {
    %c0_i32 = arith.constant 0 : i32
    %c0_i32_0 = arith.constant 0 : i32
    return %arg0, %c0_i32, %arg1 : i32, i32, i32
  }
}

</mosaic_0001>

<llo_original>
// kernel: tpu_custom_call.1
$region0: #{tpu_custom_call.1}
  #allocation0 [shape = 'u32[]', space=smem, size = 0x4, offset = 0x4, fixed_abs, tag = 'smem constant byte address 0x4 - core index']
  #allocation1 [shape = 'u32[144,128]{1,0:T(1,128)}', space=vmem, size = 0x12000, scoped, tag = 'internal scratch']
  %s0 = inlined_call_operand.hbm [shape: f32[2,4,16], index: 0, kind: input, shape index: {}]
  %s1 = inlined_call_operand.vmem [shape: f32[2,4], index: 1, kind: input, shape index: {}]
  %s2 = inlined_call_operand.vmem [shape: f32[4,2], index: 2, kind: input, shape index: {}]
  %s3 = inlined_call_operand.hbm [shape: f32[2,4,16], index: 3, kind: output, shape index: {}]
  %s4 = sld [smem:[#allocation0]]
  $region49: #{tpu_custom_call.1} parent=0
    _
  %s6 = ssub.s32 1, %s4
  %s7 = scalar_select 0, %s6, %s4
  $region1: #{tpu_custom_call.1} parent=0
    #allocation2 [shape = 'u8[4096]{0}', space=vmem, size = 0x1000, scoped, tag = 'input window, operand 0']
    #allocation3 [shape = 's32[2]{0}', space=sflag, size = 0x8, scoped, tag = 'scoped memory for tpu_custom_call.1']
    #allocation4 [shape = 's32[2]{0}', space=sflag, size = 0x8, scoped, tag = 'scoped memory for tpu_custom_call.1']
    #allocation5 [shape = 'u8[4096]{0}', space=vmem, size = 0x1000, scoped, tag = 'output window, operand 0']
    %8 = vsyncpa [#allocation3], 0
    %s9 = scalar_lea.sflag [#allocation3], 1
    %10 = vsyncpa %s9, 0
    %11 = vsyncpa [#allocation4], 0
    %s12 = scalar_lea.sflag [#allocation4], 1
    %13 = vsyncpa %s12, 0
    loop: start=0, step=1, limit=4
    $region2: #{tpu_custom_call.1} parent=1 // loop_pre_header
      _
    $region3: #{tpu_custom_call.1} parent=1 // loop_header
      %s15 = sphi 0, %s19
      %p16 = scmp.ge.s32.totalorder %s15, 4
      %s22 = sphi 0, %s34
      %s23 = sphi 0, %s30
      %s24 = sphi 0, %s22
      %s25 = sphi 0, %s23
      %s26 = sphi 0, %s24
      %s27 = sphi 0, %s25
      %s39 = sphi 0, %s41
      %s42 = sphi 0, %s39
      %s43 = sphi 0, %s42
      %s59 = sphi 0, %s43
      %s63 = sphi 0, %s63
      %s65 = sphi 0, %s63
      %s66 = sphi 0, %s65
      %s80 = sphi 0, %s66
      %s84 = sphi 0, %s84
      %s86 = sphi 0, %s84
      %s87 = sphi 0, %s86
      %s101 = sphi 0, %s87
      %s109 = sphi 0, %s111
      %s112 = sphi 0, %s109
      %s113 = sphi 0, %s112
      %s129 = sphi 0, %s113
    $region4: #{tpu_custom_call.1} parent=1 // loop_header_branch
      %18 = sbr.rel (%p16) target = $region8
    $region5: #{tpu_custom_call.1} parent=1 // loop_body
      %s20 = ssub.s32 %s15, 1
      %s21 = ssub.s32 %s15, 2
      %s28 = sadd.s32 1, %s23
      %p29 = scmp.ge.s32.totalorder %s28, 1
      %s30 = scalar_select %p29, 0, %s28
      %s31 = sadd.s32 1, %s22
      %s32 = scalar_select %p29, %s31, %s22
      %p33 = scmp.ge.s32.totalorder %s32, 2
      %s34 = scalar_select %p33, 0, %s32
      %s35 = ssub.s32 %s22, %s34
      %s36 = ssub.s32 %s23, %s30
      %s37 = sor.u32 %s35, %s36
      %p38 = scmp.eq.s32.totalorder %s37, 0
      %s40 = sadd.s32 %s39, 1
      %s41 = scalar_select %p38, %s39, %s40
      %p44 = pneg %p38
      %p45 = scmp.eq.s32.totalorder %s15, 1
      %p46 = por %p44, %p45
      %p47 = scmp.ne.s32.totalorder %s39, %s42
      %p48 = scmp.eq.s32.totalorder %s15, 0
      %p49 = por %p47, %p48
      %p50 = scmp.ne.s32.totalorder %s39, %s42
      %p51 = scmp.eq.s32.totalorder %s20, 1
      %p52 = por %p50, %p51
      %p53 = scmp.ne.s32.totalorder %s42, %s43
      %p54 = scmp.eq.s32.totalorder %s20, 0
      %p55 = por %p53, %p54
      %p56 = scmp.ne.s32.totalorder %s42, %s43
      %p57 = scmp.eq.s32.totalorder %s21, 1
      %p58 = por %p56, %p57
      %p60 = scmp.ne.s32.totalorder %s43, %s59
      %p61 = scmp.eq.s32.totalorder %s21, 0
      %p62 = por %p60, %p61
      %s64 = sadd.s32 %s63, 1
      %p67 = scmp.eq.s32.totalorder %s15, 1
      %p68 = scmp.ne.s32.totalorder %s63, %s65
      %p69 = scmp.eq.s32.totalorder %s15, 0
      %p70 = por %p68, %p69
      %p71 = scmp.ne.s32.totalorder %s63, %s65
      %p72 = scmp.eq.s32.totalorder %s20, 1
      %p73 = por %p71, %p72
      %p74 = scmp.ne.s32.totalorder %s65, %s66
      %p75 = scmp.eq.s32.totalorder %s20, 0
      %p76 = por %p74, %p75
      %p77 = scmp.ne.s32.totalorder %s65, %s66
      %p78 = scmp.eq.s32.totalorder %s21, 1
      %p79 = por %p77, %p78
      %p81 = scmp.ne.s32.totalorder %s66, %s80
      %p82 = scmp.eq.s32.totalorder %s21, 0
      %p83 = por %p81, %p82
      %s85 = sadd.s32 %s84, 1
      %p88 = scmp.eq.s32.totalorder %s15, 1
      %p89 = scmp.ne.s32.totalorder %s84, %s86
      %p90 = scmp.eq.s32.totalorder %s15, 0
      %p91 = por %p89, %p90
      %p92 = scmp.ne.s32.totalorder %s84, %s86
      %p93 = scmp.eq.s32.totalorder %s20, 1
      %p94 = por %p92, %p93
      %p95 = scmp.ne.s32.totalorder %s86, %s87
      %p96 = scmp.eq.s32.totalorder %s20, 0
      %p97 = por %p95, %p96
      %p98 = scmp.ne.s32.totalorder %s86, %s87
      %p99 = scmp.eq.s32.totalorder %s21, 1
      %p100 = por %p98, %p99
      %p102 = scmp.ne.s32.totalorder %s87, %s101
      %p103 = scmp.eq.s32.totalorder %s21, 0
      %p104 = por %p102, %p103
      %s105 = ssub.s32 %s22, %s34
      %s106 = ssub.s32 %s23, %s30
      %s107 = sor.u32 %s105, %s106
      %p108 = scmp.eq.s32.totalorder %s107, 0
      %s110 = sadd.s32 %s109, 1
      %s111 = scalar_select %p108, %s109, %s110
      %p114 = pneg %p108
      %p115 = scmp.eq.s32.totalorder %s15, 1
      %p116 = por %p114, %p115
      %p117 = scmp.ne.s32.totalorder %s109, %s112
      %p118 = scmp.eq.s32.totalorder %s15, 0
      %p119 = por %p117, %p118
      %p120 = scmp.ne.s32.totalorder %s109, %s112
      %p121 = scmp.eq.s32.totalorder %s20, 1
      %p122 = por %p120, %p121
      %p123 = scmp.ne.s32.totalorder %s112, %s113
      %p124 = scmp.eq.s32.totalorder %s20, 0
      %p125 = por %p123, %p124
      %p126 = scmp.ne.s32.totalorder %s112, %s113
      %p127 = scmp.eq.s32.totalorder %s21, 1
      %p128 = por %p126, %p127
      %p130 = scmp.ne.s32.totalorder %s113, %s129
      %p131 = scmp.eq.s32.totalorder %s21, 0
      %p132 = por %p130, %p131
      %p133 = scmp.le.s32.totalorder 1, %s15
      %p134 = scmp.lt.s32.totalorder %s15, 3
      %p135 = pnand %p133, %p134
      %p136 = pneg %p135
      // Predicated region
      $region9: #{tpu_custom_call.1} parent=5 // pred_check
        _
      $region10: #{tpu_custom_call.1} parent=5 // pred_check_branch
        %138 = sbr.rel (%p135) target = $region12
      $region11: #{tpu_custom_call.1} parent=5 // pred_region
        %s139 = ssub.s32 %s15, 1
        // Predicated region
        $region13: #{tpu_custom_call.1} parent=11 // pred_check
          %p140 = pneg %p76
        $region14: #{tpu_custom_call.1} parent=11 // pred_check_branch
          %142 = sbr.rel (%p140) target = $region16
        $region15: #{tpu_custom_call.1} parent=11 // pred_region
          _
        $region16: #{tpu_custom_call.1} parent=11 // pred_fallthru
          _
        // Predicated region
        $region17: #{tpu_custom_call.1} parent=11 // pred_check
          %p143 = pneg %p97
        $region18: #{tpu_custom_call.1} parent=11 // pred_check_branch
          %145 = sbr.rel (%p143) target = $region20
        $region19: #{tpu_custom_call.1} parent=11 // pred_region
          _
        $region20: #{tpu_custom_call.1} parent=11 // pred_fallthru
          _
      $region12: #{tpu_custom_call.1} parent=5 // pred_fallthru
        _
      %p146 = scmp.lt.s32.totalorder %s15, 2
      // Predicated region
      $region21: #{tpu_custom_call.1} parent=5 // pred_check
        %p147 = pneg %p146
      $region22: #{tpu_custom_call.1} parent=5 // pred_check_branch
        %149 = sbr.rel (%p147) target = $region24
      $region23: #{tpu_custom_call.1} parent=5 // pred_region
        // Predicated region
        $region25: #{tpu_custom_call.1} parent=23 // pred_check
          %p150 = pneg %p49
        $region26: #{tpu_custom_call.1} parent=23 // pred_check_branch
          %152 = sbr.rel (%p150) target = $region28
        $region27: #{tpu_custom_call.1} parent=23 // pred_region
          %s153 = sand.u32 %s39, 1
          %s154 = scalar_lea.sflag [#allocation3], %s153
          %s155 = sand.u32 %s39, 1
          %s156 = smul.addr %s155, 4
          %s157 = scalar_lea.vmem [#allocation2], %s156
          %s159 = ssub.s32 64, 64
          %160 = vsyncadd %s154, %s159
          %s161 = sadd.s32 %s23, %s22
          %s162 = smul.addr %s161, 64
          %s163 = scalar_lea.hbm %s0, %s162
          %s165 = sshll.u32 %s157, 4
          %s166 = int_to_ptr.vmem [resolvable:$true] %s165
          %168 = dma.hbm_to_vmem [thread:$0]  %s163, 64, %s166, %s154
        $region28: #{tpu_custom_call.1} parent=23 // pred_fallthru
          _
      $region24: #{tpu_custom_call.1} parent=5 // pred_fallthru
        _
      %p169 = scmp.le.s32.totalorder 1, %s15
      %p170 = scmp.lt.s32.totalorder %s15, 3
      %p171 = pnand %p169, %p170
      %p172 = pneg %p171
      // Predicated region
      $region29: #{tpu_custom_call.1} parent=5 // pred_check
        _
      $region30: #{tpu_custom_call.1} parent=5 // pred_check_branch
        %174 = sbr.rel (%p171) target = $region32
      $region31: #{tpu_custom_call.1} parent=5 // pred_region
        %s175 = ssub.s32 %s15, 1
        %s176 = sand.u32 %s42, 1
        %s177 = scalar_lea.sflag [#allocation3], %s176
        %s178 = sand.u32 %s42, 1
        %s179 = smul.addr %s178, 4
        %s180 = scalar_lea.vmem [#allocation2], %s179
        // Predicated region
        $region33: #{tpu_custom_call.1} parent=31 // pred_check
          %p181 = pneg %p55
        $region34: #{tpu_custom_call.1} parent=31 // pred_check_branch
          %183 = sbr.rel (%p181) target = $region36
        $region35: #{tpu_custom_call.1} parent=31 // pred_region
          %184 = dma.done %s177, 64
        $region36: #{tpu_custom_call.1} parent=31 // pred_fallthru
          _
        %s185 = sand.u32 %s42, 1
        %s186 = scalar_lea.sflag [#allocation3], %s185
        %s187 = sand.u32 %s42, 1
        %s188 = smul.addr %s187, 4
        %s189 = scalar_lea.vmem [#allocation2], %s188
        %p190 = pneg %p55
        %p191 = pneg %p52
        %p192 = pneg %p76
        %p193 = pneg %p73
        %p194 = pneg %p97
        %p195 = pneg %p94
        %p196 = pneg %p125
        %p197 = pneg %p122
        %s198 = sand.u32 %s112, 1
        %s199 = scalar_lea.sflag [#allocation4], %s198
        %s200 = sand.u32 %s112, 1
        %s201 = smul.addr %s200, 4
        %s202 = scalar_lea.vmem [#allocation5], %s201
        %v203 = vld [vmem:[%s180] sm:$0xf]
        %v204 = vld [vmem:[%s1] sm:$0x3]
        %vm205 = vcmask 31744
        %v207 = vsel %vm205, %v204, 0
        %vm209 = vcmask 1043456
        %v211 = vsel %vm209, %v203, 0
        %213 = vmatprep.subr.mxu0 0.0
        %214 = vmatpush1.msra.mxu0 %v211
        %215 = vmatprep.subr.mxu0 0.0
        %216 = vmatpush1.msra.mxu0 0.0
        %217 = vmatprep.subr.mxu0 0.0
        %218 = vmatpush1.msra.mxu0 0.0
        %219 = vmatprep.subr.mxu0 0.0
        %220 = vmatpush1.msra.mxu0 0.0
        %221 = vmatprep.subr.mxu0 0.0
        %222 = vmatpush1.msra.mxu0 0.0
        %223 = vmatprep.subr.mxu0 0.0
        %224 = vmatpush1.msra.mxu0 0.0
        %225 = vmatprep.subr.mxu0 0.0
        %226 = vmatpush1.msra.mxu0 0.0
        %227 = vmatprep.subr.mxu0 0.0
        %228 = vmatpush1.msra.mxu0 0.0
        %229 = vmatprep.subr.mxu0 0.0
        %230 = vmatpush1.msra.mxu0 0.0
        %231 = vmatprep.subr.mxu0 0.0
        %232 = vmatpush1.msra.mxu0 0.0
        %233 = vmatprep.subr.mxu0 0.0
        %234 = vmatpush1.msra.mxu0 0.0
        %235 = vmatprep.subr.mxu0 0.0
        %236 = vmatpush1.msra.mxu0 0.0
        %237 = vmatprep.subr.mxu0 0.0
        %238 = vmatpush1.msra.mxu0 0.0
        %239 = vmatprep.subr.mxu0 0.0
        %240 = vmatpush1.msra.mxu0 0.0
        %241 = vmatprep.subr.mxu0 0.0
        %242 = vmatpush1.msra.mxu0 0.0
        %243 = vmatprep.subr.mxu0 0.0
        %244 = vmatpush1.msra.mxu0 0.0
        %245 = vmatprep.subr.mxu0 0.0
        %246 = vmatpush1.msra.mxu0 0.0
        %247 = vmatprep.subr.mxu0 0.0
        %248 = vmatpush1.msra.mxu0 0.0
        %249 = vmatprep.subr.mxu0 0.0
        %250 = vmatpush1.msra.mxu0 0.0
        %251 = vmatprep.subr.mxu0 0.0
        %252 = vmatpush1.msra.mxu0 0.0
        %253 = vmatprep.subr.mxu0 0.0
        %254 = vmatpush1.msra.mxu0 0.0
        %255 = vmatprep.subr.mxu0 0.0
        %256 = vmatpush1.msra.mxu0 0.0
        %257 = vmatprep.subr.mxu0 0.0
        %258 = vmatpush1.msra.mxu0 0.0
        %259 = vmatprep.subr.mxu0 0.0
        %260 = vmatpush1.msra.mxu0 0.0
        %261 = vmatprep.subr.mxu0 0.0
        %262 = vmatpush1.msra.mxu0 0.0
        %263 = vmatprep.subr.mxu0 0.0
        %264 = vmatpush1.msra.mxu0 0.0
        %265 = vmatprep.subr.mxu0 0.0
        %266 = vmatpush1.msra.mxu0 0.0
        %267 = vmatprep.subr.mxu0 0.0
        %268 = vmatpush1.msra.mxu0 0.0
        %269 = vmatprep.subr.mxu0 0.0
        %270 = vmatpush1.msra.mxu0 0.0
        %271 = vmatprep.subr.mxu0 0.0
        %272 = vmatpush1.msra.mxu0 0.0
        %273 = vmatprep.subr.mxu0 0.0
        %274 = vmatpush1.msra.mxu0 0.0
        %275 = vmatprep.subr.mxu0 0.0
        %276 = vmatpush1.msra.mxu0 0.0
        %277 = vmatprep.mubr.f32.mxu0 0.0
        %278 = vmatmul.mubr.f32.gmra.mrb[0].mxu0 %v207
        %v279 = vpop.f32.mrb[0].mxu0
        %v280 = vadd.f32 0.0, %v279
        %v281 = vpop.f32.mrb[0].mxu0
        %282 = vdwg.mxu0
        %v283 = vmul.f32 %v280, 0.5
        %v284 = vmul.f32 %v280, 0.70710677
        %v285 = verf.f32.pop %v284
        %v286 = vadd.f32 %v285, 1.0
        %v287 = vmul.f32 %v283, %v286
        %v288 = vld [vmem:[%s2] sm:$0xf]
        %vm289 = vcmask 15360
        %v291 = vsel %vm289, %v288, 0
        %vm293 = vcmask 1041408
        %v295 = vsel %vm293, %v287, 0
        %297 = vmatprep.subr.mxu0 0.0
        %298 = vmatpush1.msra.mxu0 %v295
        %299 = vmatprep.subr.mxu0 0.0
        %300 = vmatpush1.msra.mxu0 0.0
        %301 = vmatprep.subr.mxu0 0.0
        %302 = vmatpush1.msra.mxu0 0.0
        %303 = vmatprep.subr.mxu0 0.0
        %304 = vmatpush1.msra.mxu0 0.0
        %305 = vmatprep.subr.mxu0 0.0
        %306 = vmatpush1.msra.mxu0 0.0
        %307 = vmatprep.subr.mxu0 0.0
        %308 = vmatpush1.msra.mxu0 0.0
        %309 = vmatprep.subr.mxu0 0.0
        %310 = vmatpush1.msra.mxu0 0.0
        %311 = vmatprep.subr.mxu0 0.0
        %312 = vmatpush1.msra.mxu0 0.0
        %313 = vmatprep.subr.mxu0 0.0
        %314 = vmatpush1.msra.mxu0 0.0
        %315 = vmatprep.subr.mxu0 0.0
        %316 = vmatpush1.msra.mxu0 0.0
        %317 = vmatprep.subr.mxu0 0.0
        %318 = vmatpush1.msra.mxu0 0.0
        %319 = vmatprep.subr.mxu0 0.0
        %320 = vmatpush1.msra.mxu0 0.0
        %321 = vmatprep.subr.mxu0 0.0
        %322 = vmatpush1.msra.mxu0 0.0
        %323 = vmatprep.subr.mxu0 0.0
        %324 = vmatpush1.msra.mxu0 0.0
        %325 = vmatprep.subr.mxu0 0.0
        %326 = vmatpush1.msra.mxu0 0.0
        %327 = vmatprep.subr.mxu0 0.0
        %328 = vmatpush1.msra.mxu0 0.0
        %329 = vmatprep.subr.mxu0 0.0
        %330 = vmatpush1.msra.mxu0 0.0
        %331 = vmatprep.subr.mxu0 0.0
        %332 = vmatpush1.msra.mxu0 0.0
        %333 = vmatprep.subr.mxu0 0.0
        %334 = vmatpush1.msra.mxu0 0.0
        %335 = vmatprep.subr.mxu0 0.0
        %336 = vmatpush1.msra.mxu0 0.0
        %337 = vmatprep.subr.mxu0 0.0
        %338 = vmatpush1.msra.mxu0 0.0
        %339 = vmatprep.subr.mxu0 0.0
        %340 = vmatpush1.msra.mxu0 0.0
        %341 = vmatprep.subr.mxu0 0.0
        %342 = vmatpush1.msra.mxu0 0.0
        %343 = vmatprep.subr.mxu0 0.0
        %344 = vmatpush1.msra.mxu0 0.0
        %345 = vmatprep.subr.mxu0 0.0
        %346 = vmatpush1.msra.mxu0 0.0
        %347 = vmatprep.subr.mxu0 0.0
        %348 = vmatpush1.msra.mxu0 0.0
        %349 = vmatprep.subr.mxu0 0.0
        %350 = vmatpush1.msra.mxu0 0.0
        %351 = vmatprep.subr.mxu0 0.0
        %352 = vmatpush1.msra.mxu0 0.0
        %353 = vmatprep.subr.mxu0 0.0
        %354 = vmatpush1.msra.mxu0 0.0
        %355 = vmatprep.subr.mxu0 0.0
        %356 = vmatpush1.msra.mxu0 0.0
        %357 = vmatprep.subr.mxu0 0.0
        %358 = vmatpush1.msra.mxu0 0.0
        %359 = vmatprep.subr.mxu0 0.0
        %360 = vmatpush1.msra.mxu0 0.0
        %361 = vmatprep.mubr.f32.mxu0 0.0
        %362 = vmatmul.mubr.f32.gmra.mrb[0].mxu0 %v291
        %v363 = vpop.f32.mrb[0].mxu0
        %v364 = vadd.f32 0.0, %v363
        %v365 = vpop.f32.mrb[0].mxu0
        %366 = vdwg.mxu0
        %v367 = vxor.u32 %v364, 2147483648
        %v368 = vmul.f32 %v367, 1.442695
        %v369 = vpow.pop %v368
        %v370 = vadd.f32 %v369, 1.0
        %v371 = vrcp.pop %v370
        %v372 = vmul.f32 1.0, %v371
        %v373 = vmul.f32 %v203, %v372
        %vm374 = vcmask 125952
        %375 = vst.msk [vmem:[%s202] sm:$0xf] %vm374, %v373
        %s376 = sand.u32 %s112, 1
        %s377 = scalar_lea.sflag [#allocation4], %s376
        %s378 = sand.u32 %s112, 1
        %s379 = smul.addr %s378, 4
        %s380 = scalar_lea.vmem [#allocation5], %s379
        // Predicated region
        $region37: #{tpu_custom_call.1} parent=31 // pred_check
          %p381 = pneg %p122
        $region38: #{tpu_custom_call.1} parent=31 // pred_check_branch
          %383 = sbr.rel (%p381) target = $region40
        $region39: #{tpu_custom_call.1} parent=31 // pred_region
          %s385 = ssub.s32 64, 64
          %386 = vsyncadd %s377, %s385
          %s387 = sadd.s32 %s25, %s24
          %s388 = smul.addr %s387, 64
          %s389 = scalar_lea.hbm %s3, %s388
          %s391 = sshll.u32 %s380, 4
          %s392 = int_to_ptr.vmem [resolvable:$true] %s391
          %394 = dma.vmem_to_hbm [thread:$0]  %s392, 64, %s389, %s377
        $region40: #{tpu_custom_call.1} parent=31 // pred_fallthru
          _
      $region32: #{tpu_custom_call.1} parent=5 // pred_fallthru
        _
      %p395 = scmp.le.s32.totalorder 2, %s15
      // Predicated region
      $region41: #{tpu_custom_call.1} parent=5 // pred_check
        %p396 = pneg %p395
      $region42: #{tpu_custom_call.1} parent=5 // pred_check_branch
        %398 = sbr.rel (%p396) target = $region44
      $region43: #{tpu_custom_call.1} parent=5 // pred_region
        %s399 = ssub.s32 %s15, 2
        // Predicated region
        $region45: #{tpu_custom_call.1} parent=43 // pred_check
          %p400 = pneg %p128
        $region46: #{tpu_custom_call.1} parent=43 // pred_check_branch
          %402 = sbr.rel (%p400) target = $region48
        $region47: #{tpu_custom_call.1} parent=43 // pred_region
          %s403 = sand.u32 %s113, 1
          %s404 = scalar_lea.sflag [#allocation4], %s403
          %s405 = sand.u32 %s113, 1
          %s406 = smul.addr %s405, 4
          %s407 = scalar_lea.vmem [#allocation5], %s406
          %408 = dma.done %s404, 64
        $region48: #{tpu_custom_call.1} parent=43 // pred_fallthru
          _
      $region44: #{tpu_custom_call.1} parent=5 // pred_fallthru
        _
    $region6: #{tpu_custom_call.1} parent=1 // loop_footer
      %s19 = sadd.s32 1, %s15
    $region7: #{tpu_custom_call.1} parent=1 // loop_footer_branch
      %14 = sbr.rel target = $region3
    $region8: #{tpu_custom_call.1} parent=1 // loop_exit
      _
    %409 = vsyncpa [#allocation3], 1
    %s410 = scalar_lea.sflag [#allocation3], 1
    %411 = vsyncpa %s410, 1
    %412 = vsyncpa [#allocation4], 1
    %s413 = scalar_lea.sflag [#allocation4], 1
    %414 = vsyncpa %s413, 1

</llo_original>
